<compile_context>
chip_gen: v5e
topology: v5e:2x2
jax: 0.10.0
libtpu: 0.0.40
codegen_flags: <defaults>
</compile_context>

<pallas_src>
import functools

import jax
import jax.numpy as jnp
from jax import lax
from jax.experimental import pallas as pl
from jax.experimental.pallas import tpu as pltpu

EPS = 1e-5  # PyTorch BatchNorm2d default eps


def _pick_row_tile(Ho, Wop, requested=None, target_rows=512):
    """Pick the output-row tile TH: must divide Ho; TH*Wop rows per matmul, aiming for
    ~target_rows (>=512 amortizes MXU issue/drain; Wop is already a multiple of 8)."""
    if requested is not None and Ho % requested == 0:
        return requested
    best = Ho                      # full extent is always a legal block
    for th in range(1, Ho + 1):
        if Ho % th:
            continue
        if th * Wop > target_rows:
            break
        best = th
    return best


def _acblock_kernel(x_ref, w_ref, b_ref, o_ref, *, K, TH, Wop):
    """Fused (square + ver + hor + BN) conv for one (batch, row-tile, Cout-tile) block.

    x_ref : (1, Hp, Wop, K*Cin)  bf16  kw-merged, zero-padded input (full image; the
                                       block index is constant over the m/j axes so it
                                       stays resident in VMEM across those steps)
    w_ref : (K, K*Cin, TN)       bf16  BN-folded fused weights for this Cout tile
    b_ref : (1, TN)              f32   combined BN bias for this Cout tile
    o_ref : (1, TH*Wop, TN)      f32   flattened, lane-dense output row-tile
    """
    KC = x_ref.shape[-1]
    m = pl.program_id(1)
    row0 = m * TH                               # first output row of this tile

    w = w_ref[...]
    b = b_ref[...]

    def tap(kh):
        # Row-band slice along the leading (non-lane/sublane) axis: no XLU shuffles.
        patch = x_ref[0, pl.ds(row0 + kh, TH), :, :].reshape(TH * Wop, KC)
        return jnp.dot(patch, w[kh], preferred_element_type=jnp.float32)

    acc = tap(0)
    for kh in range(1, K):                      # static, short: fully unrolled
        acc = acc + tap(kh)

    o_ref[0] = (acc + b).astype(o_ref.dtype)


def acblock_forward(x_nchw, params, *, K, padding, stride=1, dilation=1, groups=1,
                    row_tile=None, cout_tile=128):
    """ACBlock forward (non-deploy, inference-mode BN). Input/output in NCHW."""
    assert stride == 1 and dilation == 1 and groups == 1, "only defaults supported"
    N, Cin, H, W = x_nchw.shape
    Cout = params['w_sq'].shape[0]
    c = K // 2

    # ---- fold inference-mode BN into the conv weights, merge the three branches ----
    def fold_bn(pref):
        s = params[f'{pref}_gamma'] / jnp.sqrt(params[f'{pref}_var'] + EPS)
        b = params[f'{pref}_beta'] - params[f'{pref}_mean'] * s
        return s, b

    s_sq, b_sq = fold_bn('sq')
    s_v, b_v = fold_bn('ver')
    s_h, b_h = fold_bn('hor')

    wsq = jnp.transpose(params['w_sq'], (2, 3, 1, 0)) * s_sq              # (K,K,Cin,Cout)
    wv = jnp.transpose(params['w_ver'][:, :, :, 0], (2, 1, 0)) * s_v      # (K,Cin,Cout)
    wh = jnp.transpose(params['w_hor'][:, :, 0, :], (2, 1, 0)) * s_h      # (K,Cin,Cout)
    # ver taps sit in the centre column, hor taps in the centre row of the KxK stencil
    w_fused = wsq.at[:, c, :, :].add(wv).at[c, :, :, :].add(wh)           # (K,K,Cin,Cout)
    bias = b_sq + b_v + b_h                                               # (Cout,)

    # ---- pad Cout to a lane-dense multiple of the Cout tile (TN) ----
    TN = cout_tile
    Coutp = ((Cout + TN - 1) // TN) * TN
    w_fused = jnp.pad(w_fused, ((0, 0), (0, 0), (0, 0), (0, Coutp - Cout)))
    bias = jnp.pad(bias, (0, Coutp - Cout)).reshape(1, Coutp).astype(jnp.float32)

    # ---- pad input spatially, fold the K column shifts into the channel axis ----
    x = jnp.transpose(x_nchw, (0, 2, 3, 1)).astype(jnp.float32)           # NHWC
    xp = jnp.pad(x, ((0, 0), (padding, padding), (padding, padding), (0, 0)))
    Hp, Wp = H + 2 * padding, W + 2 * padding
    Ho, Wo = Hp - K + 1, Wp - K + 1
    x_m = jnp.concatenate([xp[:, :, kw:kw + Wo, :] for kw in range(K)], axis=-1)
    # pad output width to a multiple of 8 (sublane-clean reshape & out blocks)
    Wop = ((Wo + 7) // 8) * 8
    x_m = jnp.pad(x_m, ((0, 0), (0, 0), (0, Wop - Wo), (0, 0))).astype(jnp.bfloat16)
    KC = K * Cin                                                          # (N,Hp,Wop,KC)
    w_m = w_fused.reshape(K, KC, Coutp).astype(jnp.bfloat16)              # kw-major,Cin-minor

    TH = _pick_row_tile(Ho, Wop, requested=row_tile)
    n_m = Ho // TH
    Mo = Ho * Wop

    kernel = functools.partial(_acblock_kernel, K=K, TH=TH, Wop=Wop)
    out_flat = pl.pallas_call(
        kernel,
        out_shape=jax.ShapeDtypeStruct((N, Mo, Coutp), jnp.float32),
        grid=(N, n_m, Coutp // TN),
        in_specs=[
            pl.BlockSpec((1, Hp, Wop, KC), lambda n, m, j: (n, 0, 0, 0)),
            pl.BlockSpec((K, KC, TN), lambda n, m, j: (0, 0, j)),   # weights follow Cout tile
            pl.BlockSpec((1, TN), lambda n, m, j: (0, j)),
        ],
        out_specs=pl.BlockSpec((1, TH * Wop, TN), lambda n, m, j: (n, m, j)),
        compiler_params=pltpu.CompilerParams(
            dimension_semantics=("parallel", "parallel", "parallel"),
            # 48 MiB: comfortably above the 32 MiB scoped default, still below v7x's
            # 64 MiB physical VMEM; could be raised toward 96 MiB on v5e/v6e.
            vmem_limit_bytes=48 * 1024 * 1024,
        ),
    )(x_m, w_m, bias)

    out = out_flat.reshape(N, Ho, Wop, Coutp)[:, :, :Wo, :Cout]
    return jnp.transpose(out, (0, 3, 1, 2))                               # back to NCHW


def ref_acblock(x, p, K, padding):
    """Pure-JAX reference mirroring the PyTorch forward (inference-mode BN)."""
    def conv(inp, w, pad):
        return lax.conv_general_dilated(
            inp, w, window_strides=(1, 1), padding=pad,
            dimension_numbers=('NCHW', 'OIHW', 'NCHW'))

    def bn(y, pref):
        s = p[f'{pref}_gamma'] / jnp.sqrt(p[f'{pref}_var'] + EPS)
        b = p[f'{pref}_beta'] - p[f'{pref}_mean'] * s
        return y * s[None, :, None, None] + b[None, :, None, None]

    sq = bn(conv(x, p['w_sq'], [(padding, padding)] * 2), 'sq')
    center = padding - K // 2
    if center >= 0:   # Identity pad path
        ver = bn(conv(x, p['w_ver'], [(padding, padding), (center, center)]), 'ver')
        hor = bn(conv(x, p['w_hor'], [(center, center), (padding, padding)]), 'hor')
    else:             # CropLayer path
        cc = -center
        ver = bn(conv(x[:, :, :, cc:-cc], p['w_ver'], [(0, 0), (0, 0)]), 'ver')
        hor = bn(conv(x[:, :, cc:-cc, :], p['w_hor'], [(0, 0), (0, 0)]), 'hor')
    return sq + ver + hor


def _make_params(key, Cin, Cout, K):
    keys = jax.random.split(key, 16)
    params = {
        'w_sq': 0.1 * jax.random.normal(keys[0], (Cout, Cin, K, K), jnp.float32),
        'w_ver': 0.1 * jax.random.normal(keys[1], (Cout, Cin, K, 1), jnp.float32),
        'w_hor': 0.1 * jax.random.normal(keys[2], (Cout, Cin, 1, K), jnp.float32),
    }
    for i, pref in enumerate(('sq', 'ver', 'hor')):
        params[f'{pref}_gamma'] = 1.0 + 0.1 * jax.random.normal(keys[3 + 4 * i], (Cout,), jnp.float32)
        params[f'{pref}_beta'] = 0.1 * jax.random.normal(keys[4 + 4 * i], (Cout,), jnp.float32)
        params[f'{pref}_mean'] = 0.1 * jax.random.normal(keys[5 + 4 * i], (Cout,), jnp.float32)
        params[f'{pref}_var'] = jax.random.uniform(keys[6 + 4 * i], (Cout,), jnp.float32, 0.5, 1.5)
    return params


if __name__ == "__main__":
    key = jax.random.PRNGKey(0)
    # (N, Cin, H, W, Cout, K, padding, row_tile)
    cases = [
        (2, 4, 16, 16, 8, 3, 1, None),    # Identity-pad path, auto row tiling
        (2, 4, 16, 16, 8, 3, 0, None),    # CropLayer path (padding < K//2), Wo not /8
        (1, 4, 16, 16, 160, 3, 1, 4),     # Cout > 128 (2 Cout tiles) + 4 row tiles
    ]
    tol = 5e-2  # bf16 inputs/weights with f32 accumulation vs f32 reference
    for idx, (N, Cin, H, W, Cout, K, padding, row_tile) in enumerate(cases):
        pkey, xkey = jax.random.split(jax.random.fold_in(key, idx))
        params = _make_params(pkey, Cin, Cout, K)
        x = jax.random.normal(xkey, (N, Cin, H, W), jnp.float32)

        out = acblock_forward(x, params, K=K, padding=padding, row_tile=row_tile)
        out = jax.block_until_ready(out)

        ref = ref_acblock(x, params, K, padding)
        assert out.shape == ref.shape, (idx, out.shape, ref.shape)
        max_err = float(jnp.max(jnp.abs(out - ref)))
        assert max_err < tol, f"case {idx}: mismatch vs reference: {max_err}"

    print("KERNEL_OK")
</pallas_src>

<mosaic_0001>
module attributes {stable_mosaic.version = 11 : i64} {
  func.func @_acblock_kernel(%arg0: i32, %arg1: i32, %arg2: i32, %arg3: memref<1x18x16x12xbf16, #tpu.memory_space<vmem>>, %arg4: memref<3x12x128xbf16, #tpu.memory_space<vmem>>, %arg5: memref<1x128xf32, #tpu.memory_space<vmem>>, %arg6: memref<1x256x128xf32, #tpu.memory_space<vmem>>) attributes {dimension_semantics = [#tpu.dimension_semantics<parallel>, #tpu.dimension_semantics<parallel>, #tpu.dimension_semantics<parallel>], iteration_bounds = array<i64: 2, 1, 1>, scalar_prefetch = 0 : i64, scratch_operands = 0 : i64, tpu.core_type = #tpu.core_type<tc>, window_params = [{transform_indices = @transform_0, window_bounds = array<i64: 1, 18, 16, 12>}, {transform_indices = @transform_1, window_bounds = array<i64: 3, 12, 128>}, {transform_indices = @transform_2, window_bounds = array<i64: 1, 128>}, {transform_indices = @transform_3, window_bounds = array<i64: 1, 256, 128>}]} {
    %c16_i32 = arith.constant 16 : i32
    %0 = arith.muli %arg1, %c16_i32 : i32
    %c0 = arith.constant 0 : index
    %c0_0 = arith.constant 0 : index
    %c0_1 = arith.constant 0 : index
    %1 = vector.load %arg4[%c0, %c0_0, %c0_1] : memref<3x12x128xbf16, #tpu.memory_space<vmem>>, vector<3x12x128xbf16>
    %c0_2 = arith.constant 0 : index
    %c0_3 = arith.constant 0 : index
    %2 = vector.load %arg5[%c0_2, %c0_3] : memref<1x128xf32, #tpu.memory_space<vmem>>, vector<1x128xf32>
    %c0_i32 = arith.constant 0 : i32
    %3 = arith.addi %0, %c0_i32 : i32
    %c0_4 = arith.constant 0 : index
    %4 = arith.index_cast %3 : i32 to index
    %c0_5 = arith.constant 0 : index
    %c0_6 = arith.constant 0 : index
    %5 = vector.load %arg3[%c0_4, %4, %c0_5, %c0_6] : memref<1x18x16x12xbf16, #tpu.memory_space<vmem>>, vector<1x16x16x12xbf16>
    %6 = vector.shape_cast %5 : vector<1x16x16x12xbf16> to vector<16x16x12xbf16>
    %7 = vector.shape_cast %6 : vector<16x16x12xbf16> to vector<256x12xbf16>
    %8 = vector.extract_strided_slice %1 {offsets = [0, 0, 0], sizes = [1, 12, 128], strides = [1, 1, 1]} : vector<3x12x128xbf16> to vector<1x12x128xbf16>
    %9 = vector.shape_cast %8 : vector<1x12x128xbf16> to vector<12x128xbf16>
    %cst = arith.constant dense<0.000000e+00> : vector<256x128xf32>
    %10 = tpu.matmul %7, %9, %cst {dimension_numbers = #tpu.dot_dimension_numbers<[1], [0], [0], [1], [0, 0, 1, 1], [], []>} : vector<256x12xbf16>, vector<12x128xbf16>, vector<256x128xf32> -> vector<256x128xf32>
    %c1_i32 = arith.constant 1 : i32
    %11 = arith.addi %0, %c1_i32 : i32
    %c0_7 = arith.constant 0 : index
    %12 = arith.index_cast %11 : i32 to index
    %c0_8 = arith.constant 0 : index
    %c0_9 = arith.constant 0 : index
    %13 = vector.load %arg3[%c0_7, %12, %c0_8, %c0_9] : memref<1x18x16x12xbf16, #tpu.memory_space<vmem>>, vector<1x16x16x12xbf16>
    %14 = vector.shape_cast %13 : vector<1x16x16x12xbf16> to vector<16x16x12xbf16>
    %15 = vector.shape_cast %14 : vector<16x16x12xbf16> to vector<256x12xbf16>
    %16 = vector.extract_strided_slice %1 {offsets = [1, 0, 0], sizes = [1, 12, 128], strides = [1, 1, 1]} : vector<3x12x128xbf16> to vector<1x12x128xbf16>
    %17 = vector.shape_cast %16 : vector<1x12x128xbf16> to vector<12x128xbf16>
    %cst_10 = arith.constant dense<0.000000e+00> : vector<256x128xf32>
    %18 = tpu.matmul %15, %17, %cst_10 {dimension_numbers = #tpu.dot_dimension_numbers<[1], [0], [0], [1], [0, 0, 1, 1], [], []>} : vector<256x12xbf16>, vector<12x128xbf16>, vector<256x128xf32> -> vector<256x128xf32>
    %19 = arith.addf %10, %18 : vector<256x128xf32>
    %c2_i32 = arith.constant 2 : i32
    %20 = arith.addi %0, %c2_i32 : i32
    %c0_11 = arith.constant 0 : index
    %21 = arith.index_cast %20 : i32 to index
    %c0_12 = arith.constant 0 : index
    %c0_13 = arith.constant 0 : index
    %22 = vector.load %arg3[%c0_11, %21, %c0_12, %c0_13] : memref<1x18x16x12xbf16, #tpu.memory_space<vmem>>, vector<1x16x16x12xbf16>
    %23 = vector.shape_cast %22 : vector<1x16x16x12xbf16> to vector<16x16x12xbf16>
    %24 = vector.shape_cast %23 : vector<16x16x12xbf16> to vector<256x12xbf16>
    %25 = vector.extract_strided_slice %1 {offsets = [2, 0, 0], sizes = [1, 12, 128], strides = [1, 1, 1]} : vector<3x12x128xbf16> to vector<1x12x128xbf16>
    %26 = vector.shape_cast %25 : vector<1x12x128xbf16> to vector<12x128xbf16>
    %cst_14 = arith.constant dense<0.000000e+00> : vector<256x128xf32>
    %27 = tpu.matmul %24, %26, %cst_14 {dimension_numbers = #tpu.dot_dimension_numbers<[1], [0], [0], [1], [0, 0, 1, 1], [], []>} : vector<256x12xbf16>, vector<12x128xbf16>, vector<256x128xf32> -> vector<256x128xf32>
    %28 = arith.addf %19, %27 : vector<256x128xf32>
    %29 = vector.broadcast %2 : vector<1x128xf32> to vector<256x128xf32>
    %30 = arith.addf %28, %29 : vector<256x128xf32>
    %c0_15 = arith.constant 0 : index
    %c0_16 = arith.constant 0 : index
    %c0_17 = arith.constant 0 : index
    %31 = vector.load %arg6[%c0_15, %c0_16, %c0_17] : memref<1x256x128xf32, #tpu.memory_space<vmem>>, vector<1x256x128xf32>
    %32 = vector.shape_cast %31 : vector<1x256x128xf32> to vector<256x128xf32>
    %33 = vector.shape_cast %30 : vector<256x128xf32> to vector<1x256x128xf32>
    tpu.vector_store %arg6[%c0_15, %c0_16, %c0_17], %33 {strides = array<i32>} : memref<1x256x128xf32, #tpu.memory_space<vmem>>, vector<1x256x128xf32>,
    return
  }
  func.func @transform_0(%arg0: i32, %arg1: i32, %arg2: i32) -> (i32, i32, i32, i32) {
    %c0_i32 = arith.constant 0 : i32
    %c0_i32_0 = arith.constant 0 : i32
    %c0_i32_1 = arith.constant 0 : i32
    %c0_i32_2 = arith.constant 0 : i32
    return %arg0, %c0_i32, %c0_i32_0, %c0_i32_1 : i32, i32, i32, i32
  }
  func.func @transform_1(%arg0: i32, %arg1: i32, %arg2: i32) -> (i32, i32, i32) {
    %c0_i32 = arith.constant 0 : i32
    %c0_i32_0 = arith.constant 0 : i32
    %c0_i32_1 = arith.constant 0 : i32
    return %c0_i32, %c0_i32_0, %arg2 : i32, i32, i32
  }
  func.func @transform_2(%arg0: i32, %arg1: i32, %arg2: i32) -> (i32, i32) {
    %c0_i32 = arith.constant 0 : i32
    %c0_i32_0 = arith.constant 0 : i32
    return %c0_i32, %arg2 : i32, i32
  }
  func.func @transform_3(%arg0: i32, %arg1: i32, %arg2: i32) -> (i32, i32, i32) {
    %c0_i32 = arith.constant 0 : i32
    return %arg0, %arg1, %arg2 : i32, i32, i32
  }
}

</mosaic_0001>

<llo_original>
// kernel: tpu_custom_call.1
$region0: #{tpu_custom_call.1}
  #allocation0 [shape = 'u32[]', space=smem, size = 0x4, offset = 0x4, fixed_abs, tag = 'smem constant byte address 0x4 - core index']
  #allocation1 [shape = 'u32[72,128]{1,0:T(1,128)}', space=vmem, size = 0x9000, scoped, tag = 'internal scratch']
  %s0 = inlined_call_operand.vmem [shape: bf16[2,18,16,12], index: 0, kind: input, shape index: {}]
  %s1 = inlined_call_operand.vmem [shape: bf16[3,12,128], index: 1, kind: input, shape index: {}]
  %s2 = inlined_call_operand.vmem [shape: f32[1,128], index: 2, kind: input, shape index: {}]
  %s3 = inlined_call_operand.hbm [shape: f32[2,256,128], index: 3, kind: output, shape index: {}]
  %s4 = sld [smem:[#allocation0]]
  $region45: #{tpu_custom_call.1} parent=0
    _
  %s6 = ssub.s32 1, %s4
  %s7 = scalar_select 0, %s6, %s4
  $region1: #{tpu_custom_call.1} parent=0
    #allocation2 [shape = 'u8[262144]{0}', space=vmem, size = 0x40000, scoped, tag = 'output window, operand 0']
    #allocation3 [shape = 's32[2]{0}', space=sflag, size = 0x8, scoped, tag = 'scoped memory for tpu_custom_call.1']
    %8 = vsyncpa [#allocation3], 0
    %s9 = scalar_lea.sflag [#allocation3], 1
    %10 = vsyncpa %s9, 0
    loop: start=0, step=1, limit=4
    $region2: #{tpu_custom_call.1} parent=1 // loop_pre_header
      _
    $region3: #{tpu_custom_call.1} parent=1 // loop_header
      %s12 = sphi 0, %s16
      %p13 = scmp.ge.s32.totalorder %s12, 4
      %s19 = sphi 0, %s38
      %s20 = sphi 0, %s34
      %s21 = sphi 0, %s30
      %s22 = sphi 0, %s19
      %s23 = sphi 0, %s20
      %s24 = sphi 0, %s21
      %s25 = sphi 0, %s22
      %s26 = sphi 0, %s23
      %s27 = sphi 0, %s24
      %s41 = sphi 0, %s43
      %s44 = sphi 0, %s41
      %s45 = sphi 0, %s44
      %s61 = sphi 0, %s45
      %s67 = sphi 0, %s69
      %s70 = sphi 0, %s67
      %s71 = sphi 0, %s70
      %s87 = sphi 0, %s71
      %s93 = sphi 0, %s95
      %s96 = sphi 0, %s93
      %s97 = sphi 0, %s96
      %s113 = sphi 0, %s97
      %s123 = sphi 0, %s125
      %s126 = sphi 0, %s123
      %s127 = sphi 0, %s126
      %s143 = sphi 0, %s127
    $region4: #{tpu_custom_call.1} parent=1 // loop_header_branch
      %15 = sbr.rel (%p13) target = $region8
    $region5: #{tpu_custom_call.1} parent=1 // loop_body
      %s17 = ssub.s32 %s12, 1
      %s18 = ssub.s32 %s12, 2
      %s28 = sadd.s32 1, %s21
      %p29 = scmp.ge.s32.totalorder %s28, 1
      %s30 = scalar_select %p29, 0, %s28
      %s31 = sadd.s32 1, %s20
      %s32 = scalar_select %p29, %s31, %s20
      %p33 = scmp.ge.s32.totalorder %s32, 1
      %s34 = scalar_select %p33, 0, %s32
      %s35 = sadd.s32 1, %s19
      %s36 = scalar_select %p33, %s35, %s19
      %p37 = scmp.ge.s32.totalorder %s36, 2
      %s38 = scalar_select %p37, 0, %s36
      %s39 = ssub.s32 %s19, %s38
      %p40 = scmp.eq.s32.totalorder %s39, 0
      %s42 = sadd.s32 %s41, 1
      %s43 = scalar_select %p40, %s41, %s42
      %p46 = pneg %p40
      %p47 = scmp.eq.s32.totalorder %s12, 1
      %p48 = por %p46, %p47
      %p49 = scmp.ne.s32.totalorder %s41, %s44
      %p50 = scmp.eq.s32.totalorder %s12, 0
      %p51 = por %p49, %p50
      %p52 = scmp.ne.s32.totalorder %s41, %s44
      %p53 = scmp.eq.s32.totalorder %s17, 1
      %p54 = por %p52, %p53
      %p55 = scmp.ne.s32.totalorder %s44, %s45
      %p56 = scmp.eq.s32.totalorder %s17, 0
      %p57 = por %p55, %p56
      %p58 = scmp.ne.s32.totalorder %s44, %s45
      %p59 = scmp.eq.s32.totalorder %s18, 1
      %p60 = por %p58, %p59
      %p62 = scmp.ne.s32.totalorder %s45, %s61
      %p63 = scmp.eq.s32.totalorder %s18, 0
      %p64 = por %p62, %p63
      %s65 = ssub.s32 %s21, %s30
      %p66 = scmp.eq.s32.totalorder %s65, 0
      %s68 = sadd.s32 %s67, 1
      %s69 = scalar_select %p66, %s67, %s68
      %p72 = pneg %p66
      %p73 = scmp.eq.s32.totalorder %s12, 1
      %p74 = por %p72, %p73
      %p75 = scmp.ne.s32.totalorder %s67, %s70
      %p76 = scmp.eq.s32.totalorder %s12, 0
      %p77 = por %p75, %p76
      %p78 = scmp.ne.s32.totalorder %s67, %s70
      %p79 = scmp.eq.s32.totalorder %s17, 1
      %p80 = por %p78, %p79
      %p81 = scmp.ne.s32.totalorder %s70, %s71
      %p82 = scmp.eq.s32.totalorder %s17, 0
      %p83 = por %p81, %p82
      %p84 = scmp.ne.s32.totalorder %s70, %s71
      %p85 = scmp.eq.s32.totalorder %s18, 1
      %p86 = por %p84, %p85
      %p88 = scmp.ne.s32.totalorder %s71, %s87
      %p89 = scmp.eq.s32.totalorder %s18, 0
      %p90 = por %p88, %p89
      %s91 = ssub.s32 %s21, %s30
      %p92 = scmp.eq.s32.totalorder %s91, 0
      %s94 = sadd.s32 %s93, 1
      %s95 = scalar_select %p92, %s93, %s94
      %p98 = pneg %p92
      %p99 = scmp.eq.s32.totalorder %s12, 1
      %p100 = por %p98, %p99
      %p101 = scmp.ne.s32.totalorder %s93, %s96
      %p102 = scmp.eq.s32.totalorder %s12, 0
      %p103 = por %p101, %p102
      %p104 = scmp.ne.s32.totalorder %s93, %s96
      %p105 = scmp.eq.s32.totalorder %s17, 1
      %p106 = por %p104, %p105
      %p107 = scmp.ne.s32.totalorder %s96, %s97
      %p108 = scmp.eq.s32.totalorder %s17, 0
      %p109 = por %p107, %p108
      %p110 = scmp.ne.s32.totalorder %s96, %s97
      %p111 = scmp.eq.s32.totalorder %s18, 1
      %p112 = por %p110, %p111
      %p114 = scmp.ne.s32.totalorder %s97, %s113
      %p115 = scmp.eq.s32.totalorder %s18, 0
      %p116 = por %p114, %p115
      %s117 = ssub.s32 %s19, %s38
      %s118 = ssub.s32 %s20, %s34
      %s119 = sor.u32 %s117, %s118
      %s120 = ssub.s32 %s21, %s30
      %s121 = sor.u32 %s119, %s120
      %p122 = scmp.eq.s32.totalorder %s121, 0
      %s124 = sadd.s32 %s123, 1
      %s125 = scalar_select %p122, %s123, %s124
      %p128 = pneg %p122
      %p129 = scmp.eq.s32.totalorder %s12, 1
      %p130 = por %p128, %p129
      %p131 = scmp.ne.s32.totalorder %s123, %s126
      %p132 = scmp.eq.s32.totalorder %s12, 0
      %p133 = por %p131, %p132
      %p134 = scmp.ne.s32.totalorder %s123, %s126
      %p135 = scmp.eq.s32.totalorder %s17, 1
      %p136 = por %p134, %p135
      %p137 = scmp.ne.s32.totalorder %s126, %s127
      %p138 = scmp.eq.s32.totalorder %s17, 0
      %p139 = por %p137, %p138
      %p140 = scmp.ne.s32.totalorder %s126, %s127
      %p141 = scmp.eq.s32.totalorder %s18, 1
      %p142 = por %p140, %p141
      %p144 = scmp.ne.s32.totalorder %s127, %s143
      %p145 = scmp.eq.s32.totalorder %s18, 0
      %p146 = por %p144, %p145
      %p147 = scmp.le.s32.totalorder 1, %s12
      %p148 = scmp.lt.s32.totalorder %s12, 3
      %p149 = pnand %p147, %p148
      %p150 = pneg %p149
      // Predicated region
      $region9: #{tpu_custom_call.1} parent=5 // pred_check
        _
      $region10: #{tpu_custom_call.1} parent=5 // pred_check_branch
        %152 = sbr.rel (%p149) target = $region12
      $region11: #{tpu_custom_call.1} parent=5 // pred_region
        %s153 = ssub.s32 %s12, 1
        // Predicated region
        $region13: #{tpu_custom_call.1} parent=11 // pred_check
          %p154 = pneg %p83
        $region14: #{tpu_custom_call.1} parent=11 // pred_check_branch
          %156 = sbr.rel (%p154) target = $region16
        $region15: #{tpu_custom_call.1} parent=11 // pred_region
          %p157 = scmp.lt.s32.totalorder %s24, 0
          %s158 = scalar_select %p157, %s24, 0
          %s159 = smul.addr %s158, 4
          %s160 = scalar_lea.vmem %s1, %s159
        $region16: #{tpu_custom_call.1} parent=11 // pred_fallthru
          _
        // Predicated region
        $region17: #{tpu_custom_call.1} parent=11 // pred_check
          %p161 = pneg %p109
        $region18: #{tpu_custom_call.1} parent=11 // pred_check_branch
          %163 = sbr.rel (%p161) target = $region20
        $region19: #{tpu_custom_call.1} parent=11 // pred_region
          %p164 = scmp.lt.s32.totalorder %s24, 0
          %s165 = scalar_select %p164, %s24, 0
          %s166 = scalar_lea.vmem %s2, %s165
        $region20: #{tpu_custom_call.1} parent=11 // pred_fallthru
          _
      $region12: #{tpu_custom_call.1} parent=5 // pred_fallthru
        _
      %p167 = scmp.lt.s32.totalorder %s12, 2
      // Predicated region
      $region21: #{tpu_custom_call.1} parent=5 // pred_check
        %p168 = pneg %p167
      $region22: #{tpu_custom_call.1} parent=5 // pred_check_branch
        %170 = sbr.rel (%p168) target = $region24
      $region23: #{tpu_custom_call.1} parent=5 // pred_region
        // Predicated region
        $region25: #{tpu_custom_call.1} parent=23 // pred_check
          %p171 = pneg %p51
        $region26: #{tpu_custom_call.1} parent=23 // pred_check_branch
          %173 = sbr.rel (%p171) target = $region28
        $region27: #{tpu_custom_call.1} parent=23 // pred_region
          %p174 = scmp.lt.s32.totalorder %s19, 1
          %s175 = scalar_select %p174, %s19, 1
          %s176 = smul.addr %s175, 36
          %s177 = smul.addr %s176, 4
          %s178 = scalar_lea.vmem %s0, %s177
        $region28: #{tpu_custom_call.1} parent=23 // pred_fallthru
          _
      $region24: #{tpu_custom_call.1} parent=5 // pred_fallthru
        _
      %p179 = scmp.le.s32.totalorder 1, %s12
      %p180 = scmp.lt.s32.totalorder %s12, 3
      %p181 = pnand %p179, %p180
      %p182 = pneg %p181
      // Predicated region
      $region29: #{tpu_custom_call.1} parent=5 // pred_check
        _
      $region30: #{tpu_custom_call.1} parent=5 // pred_check_branch
        %184 = sbr.rel (%p181) target = $region32
      $region31: #{tpu_custom_call.1} parent=5 // pred_region
        %s185 = ssub.s32 %s12, 1
        %p186 = scmp.lt.s32.totalorder %s22, 1
        %s187 = scalar_select %p186, %s22, 1
        %s188 = smul.addr %s187, 36
        %s189 = smul.addr %s188, 4
        %s190 = scalar_lea.vmem %s0, %s189
        %p191 = pneg %p57
        %p192 = pneg %p54
        %p193 = scmp.lt.s32.totalorder %s24, 0
        %s194 = scalar_select %p193, %s24, 0
        %s195 = smul.addr %s194, 4
        %s196 = scalar_lea.vmem %s1, %s195
        %p197 = pneg %p83
        %p198 = pneg %p80
        %p199 = scmp.lt.s32.totalorder %s24, 0
        %s200 = scalar_select %p199, %s24, 0
        %s201 = scalar_lea.vmem %s2, %s200
        %p202 = pneg %p109
        %p203 = pneg %p106
        %p204 = pneg %p139
        %p205 = pneg %p136
        %s206 = sand.u32 %s126, 1
        %s207 = scalar_lea.sflag [#allocation3], %s206
        %s208 = sand.u32 %s126, 1
        %s209 = smul.addr %s208, 256
        %s210 = scalar_lea.vmem [#allocation2], %s209
        %p211 = scmp.lt.s32.totalorder %s22, 1
        %s212 = scalar_select %p211, %s22, 1
        %s213 = smul.addr %s212, 36
        %s214 = smul.addr %s213, 4
        %s215 = scalar_lea.vmem %s0, %s214
        %p216 = scmp.lt.s32.totalorder %s24, 0
        %s217 = scalar_select %p216, %s24, 0
        %s218 = smul.addr %s217, 4
        %s219 = scalar_lea.vmem %s1, %s218
        %p220 = scmp.lt.s32.totalorder %s24, 0
        %s221 = scalar_select %p220, %s24, 0
        %s222 = scalar_lea.vmem %s2, %s221
        %s223 = smul.u32 32, %s23
        %s225 = smul.u32 %s23, 16
        %v226 = vld [vmem:[%s219] sm:$0xf]
        %v227 = vld [vmem:[%s219 + $0x4] sm:$0x3]
        %v228 = vld [vmem:[%s219 + $0x8] sm:$0xf]
        %v229 = vld [vmem:[%s219 + $0xc] sm:$0x3]
        %v230 = vld [vmem:[%s219 + $0x10] sm:$0xf]
        %v231 = vld [vmem:[%s219 + $0x14] sm:$0x3]
        %v232 = vld [vmem:[%s222] sm:$0x1]
        %s233 = smul.u32 %s225, 2
        %s234 = smul.addr %s233, 4
        %s235 = scalar_lea.vmem %s215, %s234
        %v236 = vld [vmem:[%s235] sm:$0xf]
        %v237 = vld [vmem:[%s235 + $0x4] sm:$0xf]
        %v238 = vld [vmem:[%s235 + $0x8] sm:$0xf]
        %v239 = vld [vmem:[%s235 + $0xc] sm:$0xf]
        %v240 = vld [vmem:[%s235 + $0x10] sm:$0xf]
        %v241 = vld [vmem:[%s235 + $0x14] sm:$0xf]
        %v242 = vld [vmem:[%s235 + $0x18] sm:$0xf]
        %v243 = vld [vmem:[%s235 + $0x1c] sm:$0xf]
        %v244 = vld [vmem:[%s235 + $0x20] sm:$0xf]
        %v245 = vld [vmem:[%s235 + $0x24] sm:$0xf]
        %v246 = vld [vmem:[%s235 + $0x28] sm:$0xf]
        %v247 = vld [vmem:[%s235 + $0x2c] sm:$0xf]
        %v248 = vld [vmem:[%s235 + $0x30] sm:$0xf]
        %v249 = vld [vmem:[%s235 + $0x34] sm:$0xf]
        %v250 = vld [vmem:[%s235 + $0x38] sm:$0xf]
        %v251 = vld [vmem:[%s235 + $0x3c] sm:$0xf]
        %v252 = vld [vmem:[%s235 + $0x40] sm:$0xf]
        %v253 = vld [vmem:[%s235 + $0x44] sm:$0xf]
        %v254 = vld [vmem:[%s235 + $0x48] sm:$0xf]
        %v255 = vld [vmem:[%s235 + $0x4c] sm:$0xf]
        %v256 = vld [vmem:[%s235 + $0x50] sm:$0xf]
        %v257 = vld [vmem:[%s235 + $0x54] sm:$0xf]
        %v258 = vld [vmem:[%s235 + $0x58] sm:$0xf]
        %v259 = vld [vmem:[%s235 + $0x5c] sm:$0xf]
        %v260 = vld [vmem:[%s235 + $0x60] sm:$0xf]
        %v261 = vld [vmem:[%s235 + $0x64] sm:$0xf]
        %v262 = vld [vmem:[%s235 + $0x68] sm:$0xf]
        %v263 = vld [vmem:[%s235 + $0x6c] sm:$0xf]
        %v264 = vld [vmem:[%s235 + $0x70] sm:$0xf]
        %v265 = vld [vmem:[%s235 + $0x74] sm:$0xf]
        %v266 = vld [vmem:[%s235 + $0x78] sm:$0xf]
        %v267 = vld [vmem:[%s235 + $0x7c] sm:$0xf]
        %s268 = sadd.s32 %s225, 1
        %s269 = smul.u32 %s268, 2
        %s270 = smul.addr %s269, 4
        %s271 = scalar_lea.vmem %s215, %s270
        %v272 = vld [vmem:[%s271] sm:$0xf]
        %v273 = vld [vmem:[%s271 + $0x4] sm:$0xf]
        %v274 = vld [vmem:[%s271 + $0x8] sm:$0xf]
        %v275 = vld [vmem:[%s271 + $0xc] sm:$0xf]
        %v276 = vld [vmem:[%s271 + $0x10] sm:$0xf]
        %v277 = vld [vmem:[%s271 + $0x14] sm:$0xf]
        %v278 = vld [vmem:[%s271 + $0x18] sm:$0xf]
        %v279 = vld [vmem:[%s271 + $0x1c] sm:$0xf]
        %v280 = vld [vmem:[%s271 + $0x20] sm:$0xf]
        %v281 = vld [vmem:[%s271 + $0x24] sm:$0xf]
        %v282 = vld [vmem:[%s271 + $0x28] sm:$0xf]
        %v283 = vld [vmem:[%s271 + $0x2c] sm:$0xf]
        %v284 = vld [vmem:[%s271 + $0x30] sm:$0xf]
        %v285 = vld [vmem:[%s271 + $0x34] sm:$0xf]
        %v286 = vld [vmem:[%s271 + $0x38] sm:$0xf]
        %v287 = vld [vmem:[%s271 + $0x3c] sm:$0xf]
        %v288 = vld [vmem:[%s271 + $0x40] sm:$0xf]
        %v289 = vld [vmem:[%s271 + $0x44] sm:$0xf]
        %v290 = vld [vmem:[%s271 + $0x48] sm:$0xf]
        %v291 = vld [vmem:[%s271 + $0x4c] sm:$0xf]
        %v292 = vld [vmem:[%s271 + $0x50] sm:$0xf]
        %v293 = vld [vmem:[%s271 + $0x54] sm:$0xf]
        %v294 = vld [vmem:[%s271 + $0x58] sm:$0xf]
        %v295 = vld [vmem:[%s271 + $0x5c] sm:$0xf]
        %v296 = vld [vmem:[%s271 + $0x60] sm:$0xf]
        %v297 = vld [vmem:[%s271 + $0x64] sm:$0xf]
        %v298 = vld [vmem:[%s271 + $0x68] sm:$0xf]
        %v299 = vld [vmem:[%s271 + $0x6c] sm:$0xf]
        %v300 = vld [vmem:[%s271 + $0x70] sm:$0xf]
        %v301 = vld [vmem:[%s271 + $0x74] sm:$0xf]
        %v302 = vld [vmem:[%s271 + $0x78] sm:$0xf]
        %v303 = vld [vmem:[%s271 + $0x7c] sm:$0xf]
        %v336 = vunpack.c.l.b16 %v272
        %v337 = vunpack.c.l.b16 %v273
        %v338 = vunpack.c.l.b16 %v274
        %v339 = vunpack.c.l.b16 %v275
        %v340 = vunpack.c.l.b16 %v276
        %v341 = vunpack.c.l.b16 %v277
        %v342 = vunpack.c.l.b16 %v278
        %v343 = vunpack.c.l.b16 %v279
        %v344 = vunpack.c.l.b16 %v280
        %v345 = vunpack.c.l.b16 %v281
        %v346 = vunpack.c.l.b16 %v282
        %v347 = vunpack.c.l.b16 %v283
        %v348 = vunpack.c.l.b16 %v284
        %v349 = vunpack.c.l.b16 %v285
        %v350 = vunpack.c.l.b16 %v286
        %v351 = vunpack.c.l.b16 %v287
        %v352 = vunpack.c.l.b16 %v288
        %v353 = vunpack.c.l.b16 %v289
        %v354 = vunpack.c.l.b16 %v290
        %v355 = vunpack.c.l.b16 %v291
        %v356 = vunpack.c.l.b16 %v292
        %v357 = vunpack.c.l.b16 %v293
        %v358 = vunpack.c.l.b16 %v294
        %v359 = vunpack.c.l.b16 %v295
        %v360 = vunpack.c.l.b16 %v296
        %v361 = vunpack.c.l.b16 %v297
        %v362 = vunpack.c.l.b16 %v298
        %v363 = vunpack.c.l.b16 %v299
        %v364 = vunpack.c.l.b16 %v300
        %v365 = vunpack.c.l.b16 %v301
        %v366 = vunpack.c.l.b16 %v302
        %v367 = vunpack.c.l.b16 %v303
        %v368 = vpack.c.b16 %v337, %v336
        %v369 = vpack.c.b16 %v339, %v338
        %v370 = vpack.c.b16 %v341, %v340
        %v371 = vpack.c.b16 %v343, %v342
        %v372 = vpack.c.b16 %v345, %v344
        %v373 = vpack.c.b16 %v347, %v346
        %v374 = vpack.c.b16 %v349, %v348
        %v375 = vpack.c.b16 %v351, %v350
        %v376 = vpack.c.b16 %v353, %v352
        %v377 = vpack.c.b16 %v355, %v354
        %v378 = vpack.c.b16 %v357, %v356
        %v379 = vpack.c.b16 %v359, %v358
        %v380 = vpack.c.b16 %v361, %v360
        %v381 = vpack.c.b16 %v363, %v362
        %v382 = vpack.c.b16 %v365, %v364
        %v383 = vpack.c.b16 %v367, %v366
        %v386 = vunpack.c.l.b16 %v228
        %v387 = vunpack.c.l.b16 %v229
        %v388 = vpack.c.b16 %v387, %v386
        %vm389 = vcmask 97280
        %v391 = vsel %vm389, %v368, 0
        %v394 = vsel %vm389, %v369, 0
        %v397 = vsel %vm389, %v370, 0
        %v400 = vsel %vm389, %v371, 0
        %v403 = vsel %vm389, %v372, 0
        %v406 = vsel %vm389, %v373, 0
        %v409 = vsel %vm389, %v374, 0
        %v412 = vsel %vm389, %v375, 0
        %v415 = vsel %vm389, %v376, 0
        %v418 = vsel %vm389, %v377, 0
        %v421 = vsel %vm389, %v378, 0
        %v424 = vsel %vm389, %v379, 0
        %v427 = vsel %vm389, %v380, 0
        %v430 = vsel %vm389, %v381, 0
        %v433 = vsel %vm389, %v382, 0
        %v436 = vsel %vm389, %v383, 0
        %vm438 = vcmask 1045504
        %v440 = vsel %vm438, %v388, 0
        %442 = vmatpush.bf16.msra.mxu0 0
        %443 = vmatpush.bf16.msra.mxu0 0
        %444 = vmatpush.bf16.msra.mxu0 0
        %445 = vmatpush.bf16.msra.mxu0 0
        %446 = vmatpush.bf16.msra.mxu0 0
        %447 = vmatpush.bf16.msra.mxu0 0
        %448 = vmatpush.bf16.msra.mxu0 0
        %449 = vmatpush.bf16.msra.mxu0 %v440
        %450 = vmatmul.bf16.gmra.mxu0 %v391
        %v451 = vpop.f32.mrf.mxu0
        %v452 = vadd.f32 0.0, %v451
        %v453 = vpop.f32.mrf.mxu0
        %v454 = vadd.f32 0.0, %v453
        %455 = vmatmul.bf16.gmra.mxu0 %v394
        %v456 = vpop.f32.mrf.mxu0
        %v457 = vadd.f32 0.0, %v456
        %v458 = vpop.f32.mrf.mxu0
        %v459 = vadd.f32 0.0, %v458
        %460 = vmatmul.bf16.gmra.mxu0 %v397
        %v461 = vpop.f32.mrf.mxu0
        %v462 = vadd.f32 0.0, %v461
        %v463 = vpop.f32.mrf.mxu0
        %v464 = vadd.f32 0.0, %v463
        %465 = vmatmul.bf16.gmra.mxu0 %v400
        %v466 = vpop.f32.mrf.mxu0
        %v467 = vadd.f32 0.0, %v466
        %v468 = vpop.f32.mrf.mxu0
        %v469 = vadd.f32 0.0, %v468
        %470 = vmatmul.bf16.gmra.mxu0 %v403
        %v471 = vpop.f32.mrf.mxu0
        %v472 = vadd.f32 0.0, %v471
        %v473 = vpop.f32.mrf.mxu0
        %v474 = vadd.f32 0.0, %v473
        %475 = vmatmul.bf16.gmra.mxu0 %v406
        %v476 = vpop.f32.mrf.mxu0
        %v477 = vadd.f32 0.0, %v476
        %v478 = vpop.f32.mrf.mxu0
        %v479 = vadd.f32 0.0, %v478
        %480 = vmatmul.bf16.gmra.mxu0 %v409
        %v481 = vpop.f32.mrf.mxu0
        %v482 = vadd.f32 0.0, %v481
        %v483 = vpop.f32.mrf.mxu0
        %v484 = vadd.f32 0.0, %v483
        %485 = vmatmul.bf16.gmra.mxu0 %v412
        %v486 = vpop.f32.mrf.mxu0
        %v487 = vadd.f32 0.0, %v486
        %v488 = vpop.f32.mrf.mxu0
        %v489 = vadd.f32 0.0, %v488
        %490 = vmatmul.bf16.gmra.mxu0 %v415
        %v491 = vpop.f32.mrf.mxu0
        %v492 = vadd.f32 0.0, %v491
        %v493 = vpop.f32.mrf.mxu0
        %v494 = vadd.f32 0.0, %v493
        %495 = vmatmul.bf16.gmra.mxu0 %v418
        %v496 = vpop.f32.mrf.mxu0
        %v497 = vadd.f32 0.0, %v496
        %v498 = vpop.f32.mrf.mxu0
        %v499 = vadd.f32 0.0, %v498
        %500 = vmatmul.bf16.gmra.mxu0 %v421
        %v501 = vpop.f32.mrf.mxu0
        %v502 = vadd.f32 0.0, %v501
        %v503 = vpop.f32.mrf.mxu0
        %v504 = vadd.f32 0.0, %v503
        %505 = vmatmul.bf16.gmra.mxu0 %v424
        %v506 = vpop.f32.mrf.mxu0
        %v507 = vadd.f32 0.0, %v506
        %v508 = vpop.f32.mrf.mxu0
        %v509 = vadd.f32 0.0, %v508
        %510 = vmatmul.bf16.gmra.mxu0 %v427
        %v511 = vpop.f32.mrf.mxu0
        %v512 = vadd.f32 0.0, %v511
        %v513 = vpop.f32.mrf.mxu0
        %v514 = vadd.f32 0.0, %v513
        %515 = vmatmul.bf16.gmra.mxu0 %v430
        %v516 = vpop.f32.mrf.mxu0
        %v517 = vadd.f32 0.0, %v516
        %v518 = vpop.f32.mrf.mxu0
        %v519 = vadd.f32 0.0, %v518
        %520 = vmatmul.bf16.gmra.mxu0 %v433
        %v521 = vpop.f32.mrf.mxu0
        %v522 = vadd.f32 0.0, %v521
        %v523 = vpop.f32.mrf.mxu0
        %v524 = vadd.f32 0.0, %v523
        %525 = vmatmul.bf16.gmra.mxu0 %v436
        %v526 = vpop.f32.mrf.mxu0
        %v527 = vadd.f32 0.0, %v526
        %v528 = vpop.f32.mrf.mxu0
        %v529 = vadd.f32 0.0, %v528
        %530 = vdwg.mxu0
        %v563 = vunpack.c.l.b16 %v236
        %v564 = vunpack.c.l.b16 %v237
        %v565 = vunpack.c.l.b16 %v238
        %v566 = vunpack.c.l.b16 %v239
        %v567 = vunpack.c.l.b16 %v240
        %v568 = vunpack.c.l.b16 %v241
        %v569 = vunpack.c.l.b16 %v242
        %v570 = vunpack.c.l.b16 %v243
        %v571 = vunpack.c.l.b16 %v244
        %v572 = vunpack.c.l.b16 %v245
        %v573 = vunpack.c.l.b16 %v246
        %v574 = vunpack.c.l.b16 %v247
        %v575 = vunpack.c.l.b16 %v248
        %v576 = vunpack.c.l.b16 %v249
        %v577 = vunpack.c.l.b16 %v250
        %v578 = vunpack.c.l.b16 %v251
        %v579 = vunpack.c.l.b16 %v252
        %v580 = vunpack.c.l.b16 %v253
        %v581 = vunpack.c.l.b16 %v254
        %v582 = vunpack.c.l.b16 %v255
        %v583 = vunpack.c.l.b16 %v256
        %v584 = vunpack.c.l.b16 %v257
        %v585 = vunpack.c.l.b16 %v258
        %v586 = vunpack.c.l.b16 %v259
        %v587 = vunpack.c.l.b16 %v260
        %v588 = vunpack.c.l.b16 %v261
        %v589 = vunpack.c.l.b16 %v262
        %v590 = vunpack.c.l.b16 %v263
        %v591 = vunpack.c.l.b16 %v264
        %v592 = vunpack.c.l.b16 %v265
        %v593 = vunpack.c.l.b16 %v266
        %v594 = vunpack.c.l.b16 %v267
        %v595 = vpack.c.b16 %v564, %v563
        %v596 = vpack.c.b16 %v566, %v565
        %v597 = vpack.c.b16 %v568, %v567
        %v598 = vpack.c.b16 %v570, %v569
        %v599 = vpack.c.b16 %v572, %v571
        %v600 = vpack.c.b16 %v574, %v573
        %v601 = vpack.c.b16 %v576, %v575
        %v602 = vpack.c.b16 %v578, %v577
        %v603 = vpack.c.b16 %v580, %v579
        %v604 = vpack.c.b16 %v582, %v581
        %v605 = vpack.c.b16 %v584, %v583
        %v606 = vpack.c.b16 %v586, %v585
        %v607 = vpack.c.b16 %v588, %v587
        %v608 = vpack.c.b16 %v590, %v589
        %v609 = vpack.c.b16 %v592, %v591
        %v610 = vpack.c.b16 %v594, %v593
        %v613 = vunpack.c.l.b16 %v226
        %v614 = vunpack.c.l.b16 %v227
        %v615 = vpack.c.b16 %v614, %v613
        %v617 = vsel %vm389, %v595, 0
        %v620 = vsel %vm389, %v596, 0
        %v623 = vsel %vm389, %v597, 0
        %v626 = vsel %vm389, %v598, 0
        %v629 = vsel %vm389, %v599, 0
        %v632 = vsel %vm389, %v600, 0
        %v635 = vsel %vm389, %v601, 0
        %v638 = vsel %vm389, %v602, 0
        %v641 = vsel %vm389, %v603, 0
        %v644 = vsel %vm389, %v604, 0
        %v647 = vsel %vm389, %v605, 0
        %v650 = vsel %vm389, %v606, 0
        %v653 = vsel %vm389, %v607, 0
        %v656 = vsel %vm389, %v608, 0
        %v659 = vsel %vm389, %v609, 0
        %v662 = vsel %vm389, %v610, 0
        %v665 = vsel %vm438, %v615, 0
        %667 = vmatpush.bf16.msra.mxu0 0
        %668 = vmatpush.bf16.msra.mxu0 0
        %669 = vmatpush.bf16.msra.mxu0 0
        %670 = vmatpush.bf16.msra.mxu0 0
        %671 = vmatpush.bf16.msra.mxu0 0
        %672 = vmatpush.bf16.msra.mxu0 0
        %673 = vmatpush.bf16.msra.mxu0 0
        %674 = vmatpush.bf16.msra.mxu0 %v665
        %675 = vmatmul.bf16.gmra.mxu0 %v617
        %v676 = vpop.f32.mrf.mxu0
        %v677 = vadd.f32 %v452, %v676
        %v678 = vpop.f32.mrf.mxu0
        %v679 = vadd.f32 %v454, %v678
        %680 = vmatmul.bf16.gmra.mxu0 %v620
        %v681 = vpop.f32.mrf.mxu0
        %v682 = vadd.f32 %v457, %v681
        %v683 = vpop.f32.mrf.mxu0
        %v684 = vadd.f32 %v459, %v683
        %685 = vmatmul.bf16.gmra.mxu0 %v623
        %v686 = vpop.f32.mrf.mxu0
        %v687 = vadd.f32 %v462, %v686
        %v688 = vpop.f32.mrf.mxu0
        %v689 = vadd.f32 %v464, %v688
        %690 = vmatmul.bf16.gmra.mxu0 %v626
        %v691 = vpop.f32.mrf.mxu0
        %v692 = vadd.f32 %v467, %v691
        %v693 = vpop.f32.mrf.mxu0
        %v694 = vadd.f32 %v469, %v693
        %695 = vmatmul.bf16.gmra.mxu0 %v629
        %v696 = vpop.f32.mrf.mxu0
        %v697 = vadd.f32 %v472, %v696
        %v698 = vpop.f32.mrf.mxu0
        %v699 = vadd.f32 %v474, %v698
        %700 = vmatmul.bf16.gmra.mxu0 %v632
        %v701 = vpop.f32.mrf.mxu0
        %v702 = vadd.f32 %v477, %v701
        %v703 = vpop.f32.mrf.mxu0
        %v704 = vadd.f32 %v479, %v703
        %705 = vmatmul.bf16.gmra.mxu0 %v635
        %v706 = vpop.f32.mrf.mxu0
        %v707 = vadd.f32 %v482, %v706
        %v708 = vpop.f32.mrf.mxu0
        %v709 = vadd.f32 %v484, %v708
        %710 = vmatmul.bf16.gmra.mxu0 %v638
        %v711 = vpop.f32.mrf.mxu0
        %v712 = vadd.f32 %v487, %v711
        %v713 = vpop.f32.mrf.mxu0
        %v714 = vadd.f32 %v489, %v713
        %715 = vmatmul.bf16.gmra.mxu0 %v641
        %v716 = vpop.f32.mrf.mxu0
        %v717 = vadd.f32 %v492, %v716
        %v718 = vpop.f32.mrf.mxu0
        %v719 = vadd.f32 %v494, %v718
        %720 = vmatmul.bf16.gmra.mxu0 %v644
        %v721 = vpop.f32.mrf.mxu0
        %v722 = vadd.f32 %v497, %v721
        %v723 = vpop.f32.mrf.mxu0
        %v724 = vadd.f32 %v499, %v723
        %725 = vmatmul.bf16.gmra.mxu0 %v647
        %v726 = vpop.f32.mrf.mxu0
        %v727 = vadd.f32 %v502, %v726
        %v728 = vpop.f32.mrf.mxu0
        %v729 = vadd.f32 %v504, %v728
        %730 = vmatmul.bf16.gmra.mxu0 %v650
        %v731 = vpop.f32.mrf.mxu0
        %v732 = vadd.f32 %v507, %v731
        %v733 = vpop.f32.mrf.mxu0
        %v734 = vadd.f32 %v509, %v733
        %735 = vmatmul.bf16.gmra.mxu0 %v653
        %v736 = vpop.f32.mrf.mxu0
        %v737 = vadd.f32 %v512, %v736
        %v738 = vpop.f32.mrf.mxu0
        %v739 = vadd.f32 %v514, %v738
        %740 = vmatmul.bf16.gmra.mxu0 %v656
        %v741 = vpop.f32.mrf.mxu0
        %v742 = vadd.f32 %v517, %v741
        %v743 = vpop.f32.mrf.mxu0
        %v744 = vadd.f32 %v519, %v743
        %745 = vmatmul.bf16.gmra.mxu0 %v659
        %v746 = vpop.f32.mrf.mxu0
        %v747 = vadd.f32 %v522, %v746
        %v748 = vpop.f32.mrf.mxu0
        %v749 = vadd.f32 %v524, %v748
        %750 = vmatmul.bf16.gmra.mxu0 %v662
        %v751 = vpop.f32.mrf.mxu0
        %v752 = vadd.f32 %v527, %v751
        %v753 = vpop.f32.mrf.mxu0
        %v754 = vadd.f32 %v529, %v753
        %755 = vdwg.mxu0
        %s756 = sadd.s32 %s225, 2
        %s757 = smul.u32 %s756, 2
        %s758 = smul.addr %s757, 4
        %s759 = scalar_lea.vmem %s215, %s758
        %v760 = vld [vmem:[%s759] sm:$0xf]
        %v761 = vld [vmem:[%s759 + $0x4] sm:$0xf]
        %v762 = vld [vmem:[%s759 + $0x8] sm:$0xf]
        %v763 = vld [vmem:[%s759 + $0xc] sm:$0xf]
        %v764 = vld [vmem:[%s759 + $0x10] sm:$0xf]
        %v765 = vld [vmem:[%s759 + $0x14] sm:$0xf]
        %v766 = vld [vmem:[%s759 + $0x18] sm:$0xf]
        %v767 = vld [vmem:[%s759 + $0x1c] sm:$0xf]
        %v768 = vld [vmem:[%s759 + $0x20] sm:$0xf]
        %v769 = vld [vmem:[%s759 + $0x24] sm:$0xf]
        %v770 = vld [vmem:[%s759 + $0x28] sm:$0xf]
        %v771 = vld [vmem:[%s759 + $0x2c] sm:$0xf]
        %v772 = vld [vmem:[%s759 + $0x30] sm:$0xf]
        %v773 = vld [vmem:[%s759 + $0x34] sm:$0xf]
        %v774 = vld [vmem:[%s759 + $0x38] sm:$0xf]
        %v775 = vld [vmem:[%s759 + $0x3c] sm:$0xf]
        %v776 = vld [vmem:[%s759 + $0x40] sm:$0xf]
        %v777 = vld [vmem:[%s759 + $0x44] sm:$0xf]
        %v778 = vld [vmem:[%s759 + $0x48] sm:$0xf]
        %v779 = vld [vmem:[%s759 + $0x4c] sm:$0xf]
        %v780 = vld [vmem:[%s759 + $0x50] sm:$0xf]
        %v781 = vld [vmem:[%s759 + $0x54] sm:$0xf]
        %v782 = vld [vmem:[%s759 + $0x58] sm:$0xf]
        %v783 = vld [vmem:[%s759 + $0x5c] sm:$0xf]
        %v784 = vld [vmem:[%s759 + $0x60] sm:$0xf]
        %v785 = vld [vmem:[%s759 + $0x64] sm:$0xf]
        %v786 = vld [vmem:[%s759 + $0x68] sm:$0xf]
        %v787 = vld [vmem:[%s759 + $0x6c] sm:$0xf]
        %v788 = vld [vmem:[%s759 + $0x70] sm:$0xf]
        %v789 = vld [vmem:[%s759 + $0x74] sm:$0xf]
        %v790 = vld [vmem:[%s759 + $0x78] sm:$0xf]
        %v791 = vld [vmem:[%s759 + $0x7c] sm:$0xf]
        %v824 = vunpack.c.l.b16 %v760
        %v825 = vunpack.c.l.b16 %v761
        %v826 = vunpack.c.l.b16 %v762
        %v827 = vunpack.c.l.b16 %v763
        %v828 = vunpack.c.l.b16 %v764
        %v829 = vunpack.c.l.b16 %v765
        %v830 = vunpack.c.l.b16 %v766
        %v831 = vunpack.c.l.b16 %v767
        %v832 = vunpack.c.l.b16 %v768
        %v833 = vunpack.c.l.b16 %v769
        %v834 = vunpack.c.l.b16 %v770
        %v835 = vunpack.c.l.b16 %v771
        %v836 = vunpack.c.l.b16 %v772
        %v837 = vunpack.c.l.b16 %v773
        %v838 = vunpack.c.l.b16 %v774
        %v839 = vunpack.c.l.b16 %v775
        %v840 = vunpack.c.l.b16 %v776
        %v841 = vunpack.c.l.b16 %v777
        %v842 = vunpack.c.l.b16 %v778
        %v843 = vunpack.c.l.b16 %v779
        %v844 = vunpack.c.l.b16 %v780
        %v845 = vunpack.c.l.b16 %v781
        %v846 = vunpack.c.l.b16 %v782
        %v847 = vunpack.c.l.b16 %v783
        %v848 = vunpack.c.l.b16 %v784
        %v849 = vunpack.c.l.b16 %v785
        %v850 = vunpack.c.l.b16 %v786
        %v851 = vunpack.c.l.b16 %v787
        %v852 = vunpack.c.l.b16 %v788
        %v853 = vunpack.c.l.b16 %v789
        %v854 = vunpack.c.l.b16 %v790
        %v855 = vunpack.c.l.b16 %v791
        %v856 = vpack.c.b16 %v825, %v824
        %v857 = vpack.c.b16 %v827, %v826
        %v858 = vpack.c.b16 %v829, %v828
        %v859 = vpack.c.b16 %v831, %v830
        %v860 = vpack.c.b16 %v833, %v832
        %v861 = vpack.c.b16 %v835, %v834
        %v862 = vpack.c.b16 %v837, %v836
        %v863 = vpack.c.b16 %v839, %v838
        %v864 = vpack.c.b16 %v841, %v840
        %v865 = vpack.c.b16 %v843, %v842
        %v866 = vpack.c.b16 %v845, %v844
        %v867 = vpack.c.b16 %v847, %v846
        %v868 = vpack.c.b16 %v849, %v848
        %v869 = vpack.c.b16 %v851, %v850
        %v870 = vpack.c.b16 %v853, %v852
        %v871 = vpack.c.b16 %v855, %v854
        %v874 = vunpack.c.l.b16 %v230
        %v875 = vunpack.c.l.b16 %v231
        %v876 = vpack.c.b16 %v875, %v874
        %v878 = vsel %vm389, %v856, 0
        %v881 = vsel %vm389, %v857, 0
        %v884 = vsel %vm389, %v858, 0
        %v887 = vsel %vm389, %v859, 0
        %v890 = vsel %vm389, %v860, 0
        %v893 = vsel %vm389, %v861, 0
        %v896 = vsel %vm389, %v862, 0
        %v899 = vsel %vm389, %v863, 0
        %v902 = vsel %vm389, %v864, 0
        %v905 = vsel %vm389, %v865, 0
        %v908 = vsel %vm389, %v866, 0
        %v911 = vsel %vm389, %v867, 0
        %v914 = vsel %vm389, %v868, 0
        %v917 = vsel %vm389, %v869, 0
        %v920 = vsel %vm389, %v870, 0
        %v923 = vsel %vm389, %v871, 0
        %v926 = vsel %vm438, %v876, 0
        %928 = vmatpush.bf16.msra.mxu0 0
        %929 = vmatpush.bf16.msra.mxu0 0
        %930 = vmatpush.bf16.msra.mxu0 0
        %931 = vmatpush.bf16.msra.mxu0 0
        %932 = vmatpush.bf16.msra.mxu0 0
        %933 = vmatpush.bf16.msra.mxu0 0
        %934 = vmatpush.bf16.msra.mxu0 0
        %935 = vmatpush.bf16.msra.mxu0 %v926
        %936 = vmatmul.bf16.gmra.mxu0 %v878
        %v937 = vpop.f32.mrf.mxu0
        %v938 = vadd.f32 0.0, %v937
        %v939 = vpop.f32.mrf.mxu0
        %v940 = vadd.f32 0.0, %v939
        %941 = vmatmul.bf16.gmra.mxu0 %v881
        %v942 = vpop.f32.mrf.mxu0
        %v943 = vadd.f32 0.0, %v942
        %v944 = vpop.f32.mrf.mxu0
        %v945 = vadd.f32 0.0, %v944
        %946 = vmatmul.bf16.gmra.mxu0 %v884
        %v947 = vpop.f32.mrf.mxu0
        %v948 = vadd.f32 0.0, %v947
        %v949 = vpop.f32.mrf.mxu0
        %v950 = vadd.f32 0.0, %v949
        %951 = vmatmul.bf16.gmra.mxu0 %v887
        %v952 = vpop.f32.mrf.mxu0
        %v953 = vadd.f32 0.0, %v952
        %v954 = vpop.f32.mrf.mxu0
        %v955 = vadd.f32 0.0, %v954
        %956 = vmatmul.bf16.gmra.mxu0 %v890
        %v957 = vpop.f32.mrf.mxu0
        %v958 = vadd.f32 0.0, %v957
        %v959 = vpop.f32.mrf.mxu0
        %v960 = vadd.f32 0.0, %v959
        %961 = vmatmul.bf16.gmra.mxu0 %v893
        %v962 = vpop.f32.mrf.mxu0
        %v963 = vadd.f32 0.0, %v962
        %v964 = vpop.f32.mrf.mxu0
        %v965 = vadd.f32 0.0, %v964
        %966 = vmatmul.bf16.gmra.mxu0 %v896
        %v967 = vpop.f32.mrf.mxu0
        %v968 = vadd.f32 0.0, %v967
        %v969 = vpop.f32.mrf.mxu0
        %v970 = vadd.f32 0.0, %v969
        %971 = vmatmul.bf16.gmra.mxu0 %v899
        %v972 = vpop.f32.mrf.mxu0
        %v973 = vadd.f32 0.0, %v972
        %v974 = vpop.f32.mrf.mxu0
        %v975 = vadd.f32 0.0, %v974
        %976 = vmatmul.bf16.gmra.mxu0 %v902
        %v977 = vpop.f32.mrf.mxu0
        %v978 = vadd.f32 0.0, %v977
        %v979 = vpop.f32.mrf.mxu0
        %v980 = vadd.f32 0.0, %v979
        %981 = vmatmul.bf16.gmra.mxu0 %v905
        %v982 = vpop.f32.mrf.mxu0
        %v983 = vadd.f32 0.0, %v982
        %v984 = vpop.f32.mrf.mxu0
        %v985 = vadd.f32 0.0, %v984
        %986 = vmatmul.bf16.gmra.mxu0 %v908
        %v987 = vpop.f32.mrf.mxu0
        %v988 = vadd.f32 0.0, %v987
        %v989 = vpop.f32.mrf.mxu0
        %v990 = vadd.f32 0.0, %v989
        %991 = vmatmul.bf16.gmra.mxu0 %v911
        %v992 = vpop.f32.mrf.mxu0
        %v993 = vadd.f32 0.0, %v992
        %v994 = vpop.f32.mrf.mxu0
        %v995 = vadd.f32 0.0, %v994
        %996 = vmatmul.bf16.gmra.mxu0 %v914
        %v997 = vpop.f32.mrf.mxu0
        %v998 = vadd.f32 0.0, %v997
        %v999 = vpop.f32.mrf.mxu0
        %v1000 = vadd.f32 0.0, %v999
        %1001 = vmatmul.bf16.gmra.mxu0 %v917
        %v1002 = vpop.f32.mrf.mxu0
        %v1003 = vadd.f32 0.0, %v1002
        %v1004 = vpop.f32.mrf.mxu0
        %v1005 = vadd.f32 0.0, %v1004
        %1006 = vmatmul.bf16.gmra.mxu0 %v920
        %v1007 = vpop.f32.mrf.mxu0
        %v1008 = vadd.f32 0.0, %v1007
        %v1009 = vpop.f32.mrf.mxu0
        %v1010 = vadd.f32 0.0, %v1009
        %1011 = vmatmul.bf16.gmra.mxu0 %v923
        %v1012 = vpop.f32.mrf.mxu0
        %v1013 = vadd.f32 0.0, %v1012
        %v1014 = vpop.f32.mrf.mxu0
        %v1015 = vadd.f32 0.0, %v1014
        %1016 = vdwg.mxu0
        %v1017 = vadd.f32 %v677, %v938
        %v1018 = vadd.f32 %v679, %v940
        %v1019 = vadd.f32 %v682, %v943
        %v1020 = vadd.f32 %v684, %v945
        %v1021 = vadd.f32 %v687, %v948
        %v1022 = vadd.f32 %v689, %v950
        %v1023 = vadd.f32 %v692, %v953
        %v1024 = vadd.f32 %v694, %v955
        %v1025 = vadd.f32 %v697, %v958
        %v1026 = vadd.f32 %v699, %v960
        %v1027 = vadd.f32 %v702, %v963
        %v1028 = vadd.f32 %v704, %v965
        %v1029 = vadd.f32 %v707, %v968
        %v1030 = vadd.f32 %v709, %v970
        %v1031 = vadd.f32 %v712, %v973
        %v1032 = vadd.f32 %v714, %v975
        %v1033 = vadd.f32 %v717, %v978
        %v1034 = vadd.f32 %v719, %v980
        %v1035 = vadd.f32 %v722, %v983
        %v1036 = vadd.f32 %v724, %v985
        %v1037 = vadd.f32 %v727, %v988
        %v1038 = vadd.f32 %v729, %v990
        %v1039 = vadd.f32 %v732, %v993
        %v1040 = vadd.f32 %v734, %v995
        %v1041 = vadd.f32 %v737, %v998
        %v1042 = vadd.f32 %v739, %v1000
        %v1043 = vadd.f32 %v742, %v1003
        %v1044 = vadd.f32 %v744, %v1005
        %v1045 = vadd.f32 %v747, %v1008
        %v1046 = vadd.f32 %v749, %v1010
        %v1047 = vadd.f32 %v752, %v1013
        %v1048 = vadd.f32 %v754, %v1015
        %v1050 = vperm.slane %v232, 0
        %v1052 = vadd.f32 %v1017, %v1050
        %v1053 = vadd.f32 %v1018, %v1050
        %v1054 = vadd.f32 %v1019, %v1050
        %v1055 = vadd.f32 %v1020, %v1050
        %v1056 = vadd.f32 %v1021, %v1050
        %v1057 = vadd.f32 %v1022, %v1050
        %v1058 = vadd.f32 %v1023, %v1050
        %v1059 = vadd.f32 %v1024, %v1050
        %v1060 = vadd.f32 %v1025, %v1050
        %v1061 = vadd.f32 %v1026, %v1050
        %v1062 = vadd.f32 %v1027, %v1050
        %v1063 = vadd.f32 %v1028, %v1050
        %v1064 = vadd.f32 %v1029, %v1050
        %v1065 = vadd.f32 %v1030, %v1050
        %v1066 = vadd.f32 %v1031, %v1050
        %v1067 = vadd.f32 %v1032, %v1050
        %v1068 = vadd.f32 %v1033, %v1050
        %v1069 = vadd.f32 %v1034, %v1050
        %v1070 = vadd.f32 %v1035, %v1050
        %v1071 = vadd.f32 %v1036, %v1050
        %v1072 = vadd.f32 %v1037, %v1050
        %v1073 = vadd.f32 %v1038, %v1050
        %v1074 = vadd.f32 %v1039, %v1050
        %v1075 = vadd.f32 %v1040, %v1050
        %v1076 = vadd.f32 %v1041, %v1050
        %v1077 = vadd.f32 %v1042, %v1050
        %v1078 = vadd.f32 %v1043, %v1050
        %v1079 = vadd.f32 %v1044, %v1050
        %v1080 = vadd.f32 %v1045, %v1050
        %v1081 = vadd.f32 %v1046, %v1050
        %v1082 = vadd.f32 %v1047, %v1050
        %v1083 = vadd.f32 %v1048, %v1050
        %1084 = vst [vmem:[%s210] sm:$0xff] %v1052
        %1085 = vst [vmem:[%s210 + $0x8] sm:$0xff] %v1053
        %1086 = vst [vmem:[%s210 + $0x10] sm:$0xff] %v1054
        %1087 = vst [vmem:[%s210 + $0x18] sm:$0xff] %v1055
        %1088 = vst [vmem:[%s210 + $0x20] sm:$0xff] %v1056
        %1089 = vst [vmem:[%s210 + $0x28] sm:$0xff] %v1057
        %1090 = vst [vmem:[%s210 + $0x30] sm:$0xff] %v1058
        %1091 = vst [vmem:[%s210 + $0x38] sm:$0xff] %v1059
        %1092 = vst [vmem:[%s210 + $0x40] sm:$0xff] %v1060
        %1093 = vst [vmem:[%s210 + $0x48] sm:$0xff] %v1061
        %1094 = vst [vmem:[%s210 + $0x50] sm:$0xff] %v1062
        %1095 = vst [vmem:[%s210 + $0x58] sm:$0xff] %v1063
        %1096 = vst [vmem:[%s210 + $0x60] sm:$0xff] %v1064
        %1097 = vst [vmem:[%s210 + $0x68] sm:$0xff] %v1065
        %1098 = vst [vmem:[%s210 + $0x70] sm:$0xff] %v1066
        %1099 = vst [vmem:[%s210 + $0x78] sm:$0xff] %v1067
        %1100 = vst [vmem:[%s210 + $0x80] sm:$0xff] %v1068
        %1101 = vst [vmem:[%s210 + $0x88] sm:$0xff] %v1069
        %1102 = vst [vmem:[%s210 + $0x90] sm:$0xff] %v1070
        %1103 = vst [vmem:[%s210 + $0x98] sm:$0xff] %v1071
        %1104 = vst [vmem:[%s210 + $0xa0] sm:$0xff] %v1072
        %1105 = vst [vmem:[%s210 + $0xa8] sm:$0xff] %v1073
        %1106 = vst [vmem:[%s210 + $0xb0] sm:$0xff] %v1074
        %1107 = vst [vmem:[%s210 + $0xb8] sm:$0xff] %v1075
        %1108 = vst [vmem:[%s210 + $0xc0] sm:$0xff] %v1076
        %1109 = vst [vmem:[%s210 + $0xc8] sm:$0xff] %v1077
        %1110 = vst [vmem:[%s210 + $0xd0] sm:$0xff] %v1078
        %1111 = vst [vmem:[%s210 + $0xd8] sm:$0xff] %v1079
        %1112 = vst [vmem:[%s210 + $0xe0] sm:$0xff] %v1080
        %1113 = vst [vmem:[%s210 + $0xe8] sm:$0xff] %v1081
        %1114 = vst [vmem:[%s210 + $0xf0] sm:$0xff] %v1082
        %1115 = vst [vmem:[%s210 + $0xf8] sm:$0xff] %v1083
        %s1116 = sand.u32 %s126, 1
        %s1117 = scalar_lea.sflag [#allocation3], %s1116
        %s1118 = sand.u32 %s126, 1
        %s1119 = smul.addr %s1118, 256
        %s1120 = scalar_lea.vmem [#allocation2], %s1119
        // Predicated region
        $region33: #{tpu_custom_call.1} parent=31 // pred_check
          %p1121 = pneg %p136
        $region34: #{tpu_custom_call.1} parent=31 // pred_check_branch
          %1123 = sbr.rel (%p1121) target = $region36
        $region35: #{tpu_custom_call.1} parent=31 // pred_region
          %s1124 = smul.u32 32, %s23
          %1126 = vsyncadd %s1117, 0
          %s1127 = sadd.s32 %s24, %s1124
          %s1128 = smul.addr %s22, 32
          %s1129 = sadd.s32 %s1127, %s1128
          %s1130 = smul.addr %s1129, 8
          %s1131 = scalar_lea.hbm %s3, %s1130
          %s1132 = sshll.u32 %s1120, 4
          %s1133 = int_to_ptr.vmem [resolvable:$true] %s1132
          %s1134 = sshll.u32 %s1131, 4
          %s1135 = int_to_ptr.hbm [resolvable:$true] %s1134
          %1140 = dma.vmem_to_hbm [thread:$0]  %s1133, 4096, %s1135, %s1117, 128, 128, 8
        $region36: #{tpu_custom_call.1} parent=31 // pred_fallthru
          _
      $region32: #{tpu_custom_call.1} parent=5 // pred_fallthru
        _
      %p1141 = scmp.le.s32.totalorder 2, %s12
      // Predicated region
      $region37: #{tpu_custom_call.1} parent=5 // pred_check
        %p1142 = pneg %p1141
      $region38: #{tpu_custom_call.1} parent=5 // pred_check_branch
        %1144 = sbr.rel (%p1142) target = $region40
      $region39: #{tpu_custom_call.1} parent=5 // pred_region
        %s1145 = ssub.s32 %s12, 2
        // Predicated region
        $region41: #{tpu_custom_call.1} parent=39 // pred_check
          %p1146 = pneg %p142
        $region42: #{tpu_custom_call.1} parent=39 // pred_check_branch
          %1148 = sbr.rel (%p1146) target = $region44
        $region43: #{tpu_custom_call.1} parent=39 // pred_region
          %s1149 = sand.u32 %s127, 1
          %s1150 = scalar_lea.sflag [#allocation3], %s1149
          %s1151 = sand.u32 %s127, 1
          %s1152 = smul.addr %s1151, 256
          %s1153 = scalar_lea.vmem [#allocation2], %s1152
          %1155 = dma.done %s1150, 4096
        $region44: #{tpu_custom_call.1} parent=39 // pred_fallthru
          _
      $region40: #{tpu_custom_call.1} parent=5 // pred_fallthru
        _
    $region6: #{tpu_custom_call.1} parent=1 // loop_footer
      %s16 = sadd.s32 1, %s12
    $region7: #{tpu_custom_call.1} parent=1 // loop_footer_branch
      %11 = sbr.rel target = $region3
    $region8: #{tpu_custom_call.1} parent=1 // loop_exit
      _
    %1156 = vsyncpa [#allocation3], 1
    %s1157 = scalar_lea.sflag [#allocation3], 1
    %1158 = vsyncpa %s1157, 1

</llo_original>
